<compile_context>
chip_gen: v5e
topology: v5e:2x2
jax: 0.10.0
libtpu: 0.0.40
codegen_flags: <defaults>
</compile_context>

<pallas_src>
import jax
import jax.numpy as jnp
from jax import lax
from jax.experimental import pallas as pl
from jax.experimental.pallas import tpu as pltpu

# ---------------- model hyper-parameters (synthetic, small) ----------------
BATCH = 4          # config['batch_size']
SEQ = 8            # seq_length
DIM = 64           # GloVe vector dim (synthetic)
DIM_PAD = 128      # embedding dim zero-padded to a full lane width (at init)
HIDDEN = 32        # hidden_size
VOCAB = 512        # nb_classes = len(glove.itos) (synthetic)
BP = 8             # batch padded to the vreg sublane count (dense stores)

assert BATCH <= BP


def bengionet_kernel(tok_ref, emb_ref, w1t_ref, b1_ref, w2t_ref, b2_ref, out_ref):
    """Whole forward in one invocation (no grid).

    tok_ref:  (BATCH, SEQ) int32, SMEM     raw token ids
    emb_ref:  (VOCAB, DIM_PAD) f32, VMEM   frozen embedding table (zero-padded cols)
    w1t_ref:  (DIM_PAD, HIDDEN) f32        fc1 weight, pre-transposed, zero-padded rows
    b1_ref:   (1, HIDDEN) f32
    w2t_ref:  (HIDDEN, VOCAB) f32          fc2 weight, pre-transposed
    b2_ref:   (1, VOCAB) f32
    out_ref:  (BP, VOCAB) f32              logits; rows >= BATCH hold tanh(b1)@w2t + b2
                                           (well-defined, sliced off by the wrapper)
    """
    # Fused last-token embedding gather: build a one-hot (BP, VOCAB) matrix from
    # SMEM scalar reads (statically unrolled, BATCH is tiny) and multiply it with
    # the resident table on the MXU.  Rows >= BATCH stay all-zero.
    row_iota = lax.broadcasted_iota(jnp.int32, (BP, VOCAB), 0)
    col_iota = lax.broadcasted_iota(jnp.int32, (BP, VOCAB), 1)
    onehot = jnp.zeros((BP, VOCAB), jnp.float32)
    for i in range(BATCH):
        tok = tok_ref[i, SEQ - 1]                      # SMEM scalar: last token of row i
        onehot = jnp.where((row_iota == i) & (col_iota == tok),
                           jnp.float32(1.0), onehot)
    x = jnp.dot(onehot, emb_ref[...],
                preferred_element_type=jnp.float32)    # (BP, DIM_PAD)

    # fc1 + tanh, then fc2.  Weights are pre-transposed so no in-kernel relayout.
    h = jnp.tanh(
        jnp.dot(x, w1t_ref[...], preferred_element_type=jnp.float32) + b1_ref[...]
    )                                                  # (BP, HIDDEN)
    out_ref[...] = (
        jnp.dot(h, w2t_ref[...], preferred_element_type=jnp.float32) + b2_ref[...]
    ).astype(out_ref.dtype)                            # (BP, VOCAB) dense store


def prepare_params(emb_table, w1, b1, w2, b2):
    """One-time parameter preprocessing, hoisted OUT of the per-call forward.

    Transposes fc1/fc2 weights, reshapes biases to 2D, and zero-pads the
    embedding dim to 128 lanes (padded table cols x padded w1t rows contribute
    exactly zero, so results are unchanged).
    """
    emb_pad = jnp.zeros((VOCAB, DIM_PAD), jnp.float32).at[:, :DIM].set(emb_table)
    w1t_pad = jnp.zeros((DIM_PAD, HIDDEN), jnp.float32).at[:DIM, :].set(jnp.transpose(w1))
    b1_2d = b1.reshape(1, HIDDEN).astype(jnp.float32)
    w2t = jnp.transpose(w2).astype(jnp.float32)        # (HIDDEN, VOCAB)
    b2_2d = b2.reshape(1, VOCAB).astype(jnp.float32)
    return emb_pad, w1t_pad, b1_2d, w2t, b2_2d


def bengionet_forward(x_tokens, emb_pad, w1t_pad, b1_2d, w2t, b2_2d):
    """Per-call forward: exactly one pallas_call + a [:BATCH] slice."""
    out_padded = pl.pallas_call(
        bengionet_kernel,
        out_shape=jax.ShapeDtypeStruct((BP, VOCAB), jnp.float32),
        # No grid: every operand is a single full block resident on-chip.
        in_specs=[
            pl.BlockSpec(memory_space=pltpu.MemorySpace.SMEM),   # token ids
            pl.BlockSpec(memory_space=pltpu.MemorySpace.VMEM),   # emb table
            pl.BlockSpec(memory_space=pltpu.MemorySpace.VMEM),   # w1t
            pl.BlockSpec(memory_space=pltpu.MemorySpace.VMEM),   # b1
            pl.BlockSpec(memory_space=pltpu.MemorySpace.VMEM),   # w2t
            pl.BlockSpec(memory_space=pltpu.MemorySpace.VMEM),   # b2
        ],
        out_specs=pl.BlockSpec(memory_space=pltpu.MemorySpace.VMEM),
    )(x_tokens.astype(jnp.int32), emb_pad, w1t_pad, b1_2d, w2t, b2_2d)
    return out_padded[:BATCH]                          # (BATCH, VOCAB)


def reference_forward(x_tokens, emb_table, w1, b1, w2, b2):
    x_emb = jnp.take(emb_table, x_tokens, axis=0)
    out1 = jnp.tanh(jnp.einsum("bsd,hd->bsh", x_emb, w1) + b1)
    return jnp.einsum("bh,vh->bv", out1[:, -1, :], w2) + b2


if __name__ == "__main__":
    key = jax.random.PRNGKey(0)
    k_tok, k_emb, k_w1, k_b1, k_w2, k_b2 = jax.random.split(key, 6)

    # TODO(synk): real module loads frozen GloVe vectors via torchtext; here the
    # embedding table is synthesized deterministically instead.
    x_tokens = jax.random.randint(k_tok, (BATCH, SEQ), 0, VOCAB, dtype=jnp.int32)
    emb_table = jax.random.normal(k_emb, (VOCAB, DIM), dtype=jnp.float32)
    w1 = jax.random.normal(k_w1, (HIDDEN, DIM), dtype=jnp.float32) * 0.1
    b1 = jax.random.normal(k_b1, (HIDDEN,), dtype=jnp.float32) * 0.1
    w2 = jax.random.normal(k_w2, (VOCAB, HIDDEN), dtype=jnp.float32) * 0.1
    b2 = jax.random.normal(k_b2, (VOCAB,), dtype=jnp.float32) * 0.1

    # Init-time preprocessing (NOT on the per-call path).
    params = prepare_params(emb_table, w1, b1, w2, b2)
    params = jax.tree_util.tree_map(jax.block_until_ready, params)

    fwd = jax.jit(bengionet_forward)
    out = fwd(x_tokens, *params)
    out = jax.block_until_ready(out)

    ref = reference_forward(x_tokens, emb_table, w1, b1, w2, b2)
    assert out.shape == (BATCH, VOCAB)
    assert jnp.allclose(out, ref, atol=1e-4, rtol=1e-4)
    print("KERNEL_OK")
</pallas_src>

<mosaic_0001>
module attributes {stable_mosaic.version = 11 : i64} {
  func.func @bengionet_kernel(%arg0: memref<4x8xi32, #tpu.memory_space<smem>>, %arg1: memref<512x128xf32, #tpu.memory_space<vmem>>, %arg2: memref<128x32xf32, #tpu.memory_space<vmem>>, %arg3: memref<1x32xf32, #tpu.memory_space<vmem>>, %arg4: memref<32x512xf32, #tpu.memory_space<vmem>>, %arg5: memref<1x512xf32, #tpu.memory_space<vmem>>, %arg6: memref<8x512xf32, #tpu.memory_space<vmem>>) attributes {dimension_semantics = [], scalar_prefetch = 0 : i64, scratch_operands = 0 : i64, tpu.core_type = #tpu.core_type<tc>} {
    %0 = tpu.iota {dimensions = array<i32: 0>} : vector<8x512xi32>
    %1 = tpu.iota {dimensions = array<i32: 1>} : vector<8x512xi32>
    %cst = arith.constant 0.000000e+00 : f32
    %2 = vector.broadcast %cst : f32 to vector<8x512xf32>
    %c0 = arith.constant 0 : index
    %c7 = arith.constant 7 : index
    %3 = memref.load %arg0[%c0, %c7] : memref<4x8xi32, #tpu.memory_space<smem>>
    %c0_i32 = arith.constant 0 : i32
    %4 = vector.broadcast %c0_i32 : i32 to vector<8x512xi32>
    %5 = arith.cmpi eq, %0, %4 : vector<8x512xi32>
    %6 = vector.broadcast %3 : i32 to vector<8x512xi32>
    %7 = arith.cmpi eq, %1, %6 : vector<8x512xi32>
    %8 = arith.andi %5, %7 : vector<8x512xi1>
    %cst_0 = arith.constant 1.000000e+00 : f32
    %9 = vector.broadcast %cst_0 : f32 to vector<8x512xf32>
    %10 = arith.select %8, %9, %2 : vector<8x512xi1>, vector<8x512xf32>
    %c1 = arith.constant 1 : index
    %c7_1 = arith.constant 7 : index
    %11 = memref.load %arg0[%c1, %c7_1] : memref<4x8xi32, #tpu.memory_space<smem>>
    %c1_i32 = arith.constant 1 : i32
    %12 = vector.broadcast %c1_i32 : i32 to vector<8x512xi32>
    %13 = arith.cmpi eq, %0, %12 : vector<8x512xi32>
    %14 = vector.broadcast %11 : i32 to vector<8x512xi32>
    %15 = arith.cmpi eq, %1, %14 : vector<8x512xi32>
    %16 = arith.andi %13, %15 : vector<8x512xi1>
    %cst_2 = arith.constant 1.000000e+00 : f32
    %17 = vector.broadcast %cst_2 : f32 to vector<8x512xf32>
    %18 = arith.select %16, %17, %10 : vector<8x512xi1>, vector<8x512xf32>
    %c2 = arith.constant 2 : index
    %c7_3 = arith.constant 7 : index
    %19 = memref.load %arg0[%c2, %c7_3] : memref<4x8xi32, #tpu.memory_space<smem>>
    %c2_i32 = arith.constant 2 : i32
    %20 = vector.broadcast %c2_i32 : i32 to vector<8x512xi32>
    %21 = arith.cmpi eq, %0, %20 : vector<8x512xi32>
    %22 = vector.broadcast %19 : i32 to vector<8x512xi32>
    %23 = arith.cmpi eq, %1, %22 : vector<8x512xi32>
    %24 = arith.andi %21, %23 : vector<8x512xi1>
    %cst_4 = arith.constant 1.000000e+00 : f32
    %25 = vector.broadcast %cst_4 : f32 to vector<8x512xf32>
    %26 = arith.select %24, %25, %18 : vector<8x512xi1>, vector<8x512xf32>
    %c3 = arith.constant 3 : index
    %c7_5 = arith.constant 7 : index
    %27 = memref.load %arg0[%c3, %c7_5] : memref<4x8xi32, #tpu.memory_space<smem>>
    %c3_i32 = arith.constant 3 : i32
    %28 = vector.broadcast %c3_i32 : i32 to vector<8x512xi32>
    %29 = arith.cmpi eq, %0, %28 : vector<8x512xi32>
    %30 = vector.broadcast %27 : i32 to vector<8x512xi32>
    %31 = arith.cmpi eq, %1, %30 : vector<8x512xi32>
    %32 = arith.andi %29, %31 : vector<8x512xi1>
    %cst_6 = arith.constant 1.000000e+00 : f32
    %33 = vector.broadcast %cst_6 : f32 to vector<8x512xf32>
    %34 = arith.select %32, %33, %26 : vector<8x512xi1>, vector<8x512xf32>
    %c0_7 = arith.constant 0 : index
    %c0_8 = arith.constant 0 : index
    %35 = vector.load %arg1[%c0_7, %c0_8] : memref<512x128xf32, #tpu.memory_space<vmem>>, vector<512x128xf32>
    %cst_9 = arith.constant dense<0.000000e+00> : vector<8x128xf32>
    %36 = tpu.matmul %34, %35, %cst_9 {dimension_numbers = #tpu.dot_dimension_numbers<[1], [0], [0], [1], [0, 0, 1, 1], [], []>} : vector<8x512xf32>, vector<512x128xf32>, vector<8x128xf32> -> vector<8x128xf32>
    %c0_10 = arith.constant 0 : index
    %c0_11 = arith.constant 0 : index
    %37 = vector.load %arg2[%c0_10, %c0_11] : memref<128x32xf32, #tpu.memory_space<vmem>>, vector<128x32xf32>
    %cst_12 = arith.constant dense<0.000000e+00> : vector<8x32xf32>
    %38 = tpu.matmul %36, %37, %cst_12 {dimension_numbers = #tpu.dot_dimension_numbers<[1], [0], [0], [1], [0, 0, 1, 1], [], []>} : vector<8x128xf32>, vector<128x32xf32>, vector<8x32xf32> -> vector<8x32xf32>
    %c0_13 = arith.constant 0 : index
    %c0_14 = arith.constant 0 : index
    %39 = vector.load %arg3[%c0_13, %c0_14] : memref<1x32xf32, #tpu.memory_space<vmem>>, vector<1x32xf32>
    %40 = vector.broadcast %39 : vector<1x32xf32> to vector<8x32xf32>
    %41 = arith.addf %38, %40 : vector<8x32xf32>
    %42 = math.tanh %41 : vector<8x32xf32>
    %c0_15 = arith.constant 0 : index
    %c0_16 = arith.constant 0 : index
    %43 = vector.load %arg4[%c0_15, %c0_16] : memref<32x512xf32, #tpu.memory_space<vmem>>, vector<32x512xf32>
    %cst_17 = arith.constant dense<0.000000e+00> : vector<8x512xf32>
    %44 = tpu.matmul %42, %43, %cst_17 {dimension_numbers = #tpu.dot_dimension_numbers<[1], [0], [0], [1], [0, 0, 1, 1], [], []>} : vector<8x32xf32>, vector<32x512xf32>, vector<8x512xf32> -> vector<8x512xf32>
    %c0_18 = arith.constant 0 : index
    %c0_19 = arith.constant 0 : index
    %45 = vector.load %arg5[%c0_18, %c0_19] : memref<1x512xf32, #tpu.memory_space<vmem>>, vector<1x512xf32>
    %46 = vector.broadcast %45 : vector<1x512xf32> to vector<8x512xf32>
    %47 = arith.addf %44, %46 : vector<8x512xf32>
    %c0_20 = arith.constant 0 : index
    %c0_21 = arith.constant 0 : index
    %48 = vector.load %arg6[%c0_20, %c0_21] : memref<8x512xf32, #tpu.memory_space<vmem>>, vector<8x512xf32>
    tpu.vector_store %arg6[%c0_20, %c0_21], %47 {strides = array<i32>} : memref<8x512xf32, #tpu.memory_space<vmem>>, vector<8x512xf32>,
    return
  }
}

</mosaic_0001>

<llo_original>
// kernel: bengionet_forward.1
$region0: #{bengionet_forward.1}
  #allocation0 [shape = 'u32[]', space=smem, size = 0x4, offset = 0x4, fixed_abs, tag = 'smem constant byte address 0x4 - core index']
  #allocation1 [shape = 'u32[72,128]{1,0:T(1,128)}', space=vmem, size = 0x9000, scoped, tag = 'internal scratch']
  %s0 = inlined_call_operand.vmem [shape: s32[4,8], index: 0, kind: input, shape index: {}]
  %s1 = inlined_call_operand.hbm [shape: f32[512,128], index: 1, kind: input, shape index: {}]
  %s2 = inlined_call_operand.vmem [shape: f32[128,32], index: 2, kind: input, shape index: {}]
  %s3 = inlined_call_operand.vmem [shape: f32[1,32], index: 3, kind: input, shape index: {}]
  %s4 = inlined_call_operand.vmem [shape: f32[32,512], index: 4, kind: input, shape index: {}]
  %s5 = inlined_call_operand.vmem [shape: f32[1,512], index: 5, kind: input, shape index: {}]
  %s6 = inlined_call_operand.vmem [shape: f32[8,512], index: 6, kind: output, shape index: {}]
  %s7 = sld [smem:[#allocation0]]
  $region42: #{bengionet_forward.1} parent=0
    _
  %s9 = ssub.s32 1, %s7
  %s10 = scalar_select 0, %s9, %s7
  $region1: #{bengionet_forward.1} parent=0
    #allocation2 [shape = 'u8[2048]{0}', space=smem, size = 0x800, scoped, tag = 'input window, operand 0, single buffered']
    #allocation3 [shape = 's32[1]{0}', space=sflag, size = 0x4, scoped, tag = 'scoped memory for bengionet_forward.1']
    #allocation4 [shape = 's32[1]{0}', space=sflag, size = 0x4, scoped, tag = 'scoped memory for bengionet_forward.1']
    #allocation5 [shape = 'u8[262144]{0}', space=vmem, size = 0x40000, scoped, tag = 'input window, operand 1, single buffered']
    %11 = vsyncpa [#allocation4], 0
    %12 = vsyncpa [#allocation3], 0
    // Predicated region
    $region2: #{bengionet_forward.1} parent=1 // pred_check
      _
    $region3: #{bengionet_forward.1} parent=1 // pred_check_branch
      %14 = sbr.rel (0) target = $region5
    $region4: #{bengionet_forward.1} parent=1 // pred_region
      %16 = vsyncadd [#allocation4], 0
      %s18 = sshll.u32 %s0, 4
      %s19 = int_to_ptr.vmem [resolvable:$true] %s18
      %21 = dma.vmem_to_smem %s19, 64, [#allocation2], [#allocation4]
    $region5: #{bengionet_forward.1} parent=1 // pred_fallthru
      _
    // Predicated region
    $region6: #{bengionet_forward.1} parent=1 // pred_check
      _
    $region7: #{bengionet_forward.1} parent=1 // pred_check_branch
      %23 = sbr.rel (0) target = $region9
    $region8: #{bengionet_forward.1} parent=1 // pred_region
      %25 = vsyncadd [#allocation3], 0
      %s26 = sshll.u32 %s1, 4
      %s27 = int_to_ptr.hbm [resolvable:$true] %s26
      %s28 = sshll.u32 [#allocation5], 4
      %s29 = int_to_ptr.vmem [resolvable:$true] %s28
      %34 = dma.hbm_to_vmem [thread:$0]  %s27, 8192, %s29, [#allocation3], 128, 128, 8
    $region9: #{bengionet_forward.1} parent=1 // pred_fallthru
      _
    // Predicated region
    $region10: #{bengionet_forward.1} parent=1 // pred_check
      _
    $region11: #{bengionet_forward.1} parent=1 // pred_check_branch
      %36 = sbr.rel (0) target = $region13
    $region12: #{bengionet_forward.1} parent=1 // pred_region
      _
    $region13: #{bengionet_forward.1} parent=1 // pred_fallthru
      _
    // Predicated region
    $region14: #{bengionet_forward.1} parent=1 // pred_check
      _
    $region15: #{bengionet_forward.1} parent=1 // pred_check_branch
      %38 = sbr.rel (0) target = $region17
    $region16: #{bengionet_forward.1} parent=1 // pred_region
      _
    $region17: #{bengionet_forward.1} parent=1 // pred_fallthru
      _
    // Predicated region
    $region18: #{bengionet_forward.1} parent=1 // pred_check
      _
    $region19: #{bengionet_forward.1} parent=1 // pred_check_branch
      %40 = sbr.rel (0) target = $region21
    $region20: #{bengionet_forward.1} parent=1 // pred_region
      _
    $region21: #{bengionet_forward.1} parent=1 // pred_fallthru
      _
    // Predicated region
    $region22: #{bengionet_forward.1} parent=1 // pred_check
      _
    $region23: #{bengionet_forward.1} parent=1 // pred_check_branch
      %42 = sbr.rel (0) target = $region25
    $region24: #{bengionet_forward.1} parent=1 // pred_region
      _
    $region25: #{bengionet_forward.1} parent=1 // pred_fallthru
      _
    // Predicated region
    $region26: #{bengionet_forward.1} parent=1 // pred_check
      _
    $region27: #{bengionet_forward.1} parent=1 // pred_check_branch
      %44 = sbr.rel (0) target = $region29
    $region28: #{bengionet_forward.1} parent=1 // pred_region
      %46 = dma.done [#allocation4], 64
    $region29: #{bengionet_forward.1} parent=1 // pred_fallthru
      _
    // Predicated region
    $region30: #{bengionet_forward.1} parent=1 // pred_check
      _
    $region31: #{bengionet_forward.1} parent=1 // pred_check_branch
      %48 = sbr.rel (0) target = $region33
    $region32: #{bengionet_forward.1} parent=1 // pred_region
      %50 = dma.done [#allocation3], 8192
    $region33: #{bengionet_forward.1} parent=1 // pred_fallthru
      _
    %51 = sfence
    %v52 = vlaneseq
    %v53 = vshrl.u32 %v52, 7
    %v54 = vlaneseq
    %v55 = vand.u32 %v54, 127
    %v56 = vadd.s32 %v55, 128
    %v57 = vadd.s32 %v55, 256
    %v58 = vadd.s32 %v55, 384
    %s59 = sld [smem:[#allocation2 + $0x7]]
    %vm60 = vcmp.eq.s32.totalorder %v53, 0
    %v61 = vstv %s59
    %vm62 = vcmp.eq.s32.totalorder %v55, %v61
    %vm63 = vcmp.eq.s32.totalorder %v56, %v61
    %vm64 = vcmp.eq.s32.totalorder %v57, %v61
    %vm65 = vcmp.eq.s32.totalorder %v58, %v61
    %vm66 = vmand %vm60, %vm62
    %vm67 = vmand %vm60, %vm63
    %vm68 = vmand %vm60, %vm64
    %vm69 = vmand %vm60, %vm65
    %v70 = vsel %vm66, 1.0, 0.0
    %v71 = vsel %vm67, 1.0, 0.0
    %v72 = vsel %vm68, 1.0, 0.0
    %v73 = vsel %vm69, 1.0, 0.0
    %s74 = sld [smem:[#allocation2 + $0x87]]
    %vm75 = vcmp.eq.s32.totalorder %v53, 1
    %v76 = vstv %s74
    %vm77 = vcmp.eq.s32.totalorder %v55, %v76
    %vm78 = vcmp.eq.s32.totalorder %v56, %v76
    %vm79 = vcmp.eq.s32.totalorder %v57, %v76
    %vm80 = vcmp.eq.s32.totalorder %v58, %v76
    %vm81 = vmand %vm75, %vm77
    %vm82 = vmand %vm75, %vm78
    %vm83 = vmand %vm75, %vm79
    %vm84 = vmand %vm75, %vm80
    %v85 = vsel %vm81, 1.0, %v70
    %v86 = vsel %vm82, 1.0, %v71
    %v87 = vsel %vm83, 1.0, %v72
    %v88 = vsel %vm84, 1.0, %v73
    %s89 = sld [smem:[#allocation2 + $0x107]]
    %vm90 = vcmp.eq.s32.totalorder %v53, 2
    %v91 = vstv %s89
    %vm92 = vcmp.eq.s32.totalorder %v55, %v91
    %vm93 = vcmp.eq.s32.totalorder %v56, %v91
    %vm94 = vcmp.eq.s32.totalorder %v57, %v91
    %vm95 = vcmp.eq.s32.totalorder %v58, %v91
    %vm96 = vmand %vm90, %vm92
    %vm97 = vmand %vm90, %vm93
    %vm98 = vmand %vm90, %vm94
    %vm99 = vmand %vm90, %vm95
    %v100 = vsel %vm96, 1.0, %v85
    %v101 = vsel %vm97, 1.0, %v86
    %v102 = vsel %vm98, 1.0, %v87
    %v103 = vsel %vm99, 1.0, %v88
    %s104 = sld [smem:[#allocation2 + $0x187]]
    %vm105 = vcmp.eq.s32.totalorder %v53, 3
    %v106 = vstv %s104
    %vm107 = vcmp.eq.s32.totalorder %v55, %v106
    %vm108 = vcmp.eq.s32.totalorder %v56, %v106
    %vm109 = vcmp.eq.s32.totalorder %v57, %v106
    %vm110 = vcmp.eq.s32.totalorder %v58, %v106
    %vm111 = vmand %vm105, %vm107
    %vm112 = vmand %vm105, %vm108
    %vm113 = vmand %vm105, %vm109
    %vm114 = vmand %vm105, %vm110
    %v115 = vsel %vm111, 1.0, %v100
    %v116 = vsel %vm112, 1.0, %v101
    %v117 = vsel %vm113, 1.0, %v102
    %v118 = vsel %vm114, 1.0, %v103
    %v119 = vld [vmem:[#allocation5] sm:$0xff]
    %v120 = vld [vmem:[#allocation5 + $0x8] sm:$0xff]
    %v121 = vld [vmem:[#allocation5 + $0x10] sm:$0xff]
    %v122 = vld [vmem:[#allocation5 + $0x18] sm:$0xff]
    %v123 = vld [vmem:[#allocation5 + $0x20] sm:$0xff]
    %v124 = vld [vmem:[#allocation5 + $0x28] sm:$0xff]
    %v125 = vld [vmem:[#allocation5 + $0x30] sm:$0xff]
    %v126 = vld [vmem:[#allocation5 + $0x38] sm:$0xff]
    %v127 = vld [vmem:[#allocation5 + $0x40] sm:$0xff]
    %v128 = vld [vmem:[#allocation5 + $0x48] sm:$0xff]
    %v129 = vld [vmem:[#allocation5 + $0x50] sm:$0xff]
    %v130 = vld [vmem:[#allocation5 + $0x58] sm:$0xff]
    %v131 = vld [vmem:[#allocation5 + $0x60] sm:$0xff]
    %v132 = vld [vmem:[#allocation5 + $0x68] sm:$0xff]
    %v133 = vld [vmem:[#allocation5 + $0x70] sm:$0xff]
    %v134 = vld [vmem:[#allocation5 + $0x78] sm:$0xff]
    %v135 = vld [vmem:[#allocation5 + $0x80] sm:$0xff]
    %v136 = vld [vmem:[#allocation5 + $0x88] sm:$0xff]
    %v137 = vld [vmem:[#allocation5 + $0x90] sm:$0xff]
    %v138 = vld [vmem:[#allocation5 + $0x98] sm:$0xff]
    %v139 = vld [vmem:[#allocation5 + $0xa0] sm:$0xff]
    %v140 = vld [vmem:[#allocation5 + $0xa8] sm:$0xff]
    %v141 = vld [vmem:[#allocation5 + $0xb0] sm:$0xff]
    %v142 = vld [vmem:[#allocation5 + $0xb8] sm:$0xff]
    %v143 = vld [vmem:[#allocation5 + $0xc0] sm:$0xff]
    %v144 = vld [vmem:[#allocation5 + $0xc8] sm:$0xff]
    %v145 = vld [vmem:[#allocation5 + $0xd0] sm:$0xff]
    %v146 = vld [vmem:[#allocation5 + $0xd8] sm:$0xff]
    %v147 = vld [vmem:[#allocation5 + $0xe0] sm:$0xff]
    %v148 = vld [vmem:[#allocation5 + $0xe8] sm:$0xff]
    %v149 = vld [vmem:[#allocation5 + $0xf0] sm:$0xff]
    %v150 = vld [vmem:[#allocation5 + $0xf8] sm:$0xff]
    %v151 = vld [vmem:[#allocation5 + $0x100] sm:$0xff]
    %v152 = vld [vmem:[#allocation5 + $0x108] sm:$0xff]
    %v153 = vld [vmem:[#allocation5 + $0x110] sm:$0xff]
    %v154 = vld [vmem:[#allocation5 + $0x118] sm:$0xff]
    %v155 = vld [vmem:[#allocation5 + $0x120] sm:$0xff]
    %v156 = vld [vmem:[#allocation5 + $0x128] sm:$0xff]
    %v157 = vld [vmem:[#allocation5 + $0x130] sm:$0xff]
    %v158 = vld [vmem:[#allocation5 + $0x138] sm:$0xff]
    %v159 = vld [vmem:[#allocation5 + $0x140] sm:$0xff]
    %v160 = vld [vmem:[#allocation5 + $0x148] sm:$0xff]
    %v161 = vld [vmem:[#allocation5 + $0x150] sm:$0xff]
    %v162 = vld [vmem:[#allocation5 + $0x158] sm:$0xff]
    %v163 = vld [vmem:[#allocation5 + $0x160] sm:$0xff]
    %v164 = vld [vmem:[#allocation5 + $0x168] sm:$0xff]
    %v165 = vld [vmem:[#allocation5 + $0x170] sm:$0xff]
    %v166 = vld [vmem:[#allocation5 + $0x178] sm:$0xff]
    %v167 = vld [vmem:[#allocation5 + $0x180] sm:$0xff]
    %v168 = vld [vmem:[#allocation5 + $0x188] sm:$0xff]
    %v169 = vld [vmem:[#allocation5 + $0x190] sm:$0xff]
    %v170 = vld [vmem:[#allocation5 + $0x198] sm:$0xff]
    %v171 = vld [vmem:[#allocation5 + $0x1a0] sm:$0xff]
    %v172 = vld [vmem:[#allocation5 + $0x1a8] sm:$0xff]
    %v173 = vld [vmem:[#allocation5 + $0x1b0] sm:$0xff]
    %v174 = vld [vmem:[#allocation5 + $0x1b8] sm:$0xff]
    %v175 = vld [vmem:[#allocation5 + $0x1c0] sm:$0xff]
    %v176 = vld [vmem:[#allocation5 + $0x1c8] sm:$0xff]
    %v177 = vld [vmem:[#allocation5 + $0x1d0] sm:$0xff]
    %v178 = vld [vmem:[#allocation5 + $0x1d8] sm:$0xff]
    %v179 = vld [vmem:[#allocation5 + $0x1e0] sm:$0xff]
    %v180 = vld [vmem:[#allocation5 + $0x1e8] sm:$0xff]
    %v181 = vld [vmem:[#allocation5 + $0x1f0] sm:$0xff]
    %v182 = vld [vmem:[#allocation5 + $0x1f8] sm:$0xff]
    %183 = vmatpush.msra.mxu0 %v134
    %184 = vmatpush.msra.mxu0 %v133
    %185 = vmatpush.msra.mxu0 %v132
    %186 = vmatpush.msra.mxu0 %v131
    %187 = vmatpush.msra.mxu0 %v130
    %188 = vmatpush.msra.mxu0 %v129
    %189 = vmatpush.msra.mxu0 %v128
    %190 = vmatpush.msra.mxu0 %v127
    %191 = vmatpush.msra.mxu0 %v126
    %192 = vmatpush.msra.mxu0 %v125
    %193 = vmatpush.msra.mxu0 %v124
    %194 = vmatpush.msra.mxu0 %v123
    %195 = vmatpush.msra.mxu0 %v122
    %196 = vmatpush.msra.mxu0 %v121
    %197 = vmatpush.msra.mxu0 %v120
    %198 = vmatpush.msra.mxu0 %v119
    %199 = vmatmul.f32.gmra.mxu0 %v115
    %v200 = vpop.f32.mrf.mxu0
    %v201 = vadd.f32 0.0, %v200
    %202 = vdwg.mxu0
    %203 = vmatpush.msra.mxu0 %v150
    %204 = vmatpush.msra.mxu0 %v149
    %205 = vmatpush.msra.mxu0 %v148
    %206 = vmatpush.msra.mxu0 %v147
    %207 = vmatpush.msra.mxu0 %v146
    %208 = vmatpush.msra.mxu0 %v145
    %209 = vmatpush.msra.mxu0 %v144
    %210 = vmatpush.msra.mxu0 %v143
    %211 = vmatpush.msra.mxu0 %v142
    %212 = vmatpush.msra.mxu0 %v141
    %213 = vmatpush.msra.mxu0 %v140
    %214 = vmatpush.msra.mxu0 %v139
    %215 = vmatpush.msra.mxu0 %v138
    %216 = vmatpush.msra.mxu0 %v137
    %217 = vmatpush.msra.mxu0 %v136
    %218 = vmatpush.msra.mxu0 %v135
    %219 = vmatmul.f32.gmra.mxu0 %v116
    %v220 = vpop.f32.mrf.mxu0
    %v221 = vadd.f32 %v201, %v220
    %222 = vdwg.mxu0
    %223 = vmatpush.msra.mxu0 %v166
    %224 = vmatpush.msra.mxu0 %v165
    %225 = vmatpush.msra.mxu0 %v164
    %226 = vmatpush.msra.mxu0 %v163
    %227 = vmatpush.msra.mxu0 %v162
    %228 = vmatpush.msra.mxu0 %v161
    %229 = vmatpush.msra.mxu0 %v160
    %230 = vmatpush.msra.mxu0 %v159
    %231 = vmatpush.msra.mxu0 %v158
    %232 = vmatpush.msra.mxu0 %v157
    %233 = vmatpush.msra.mxu0 %v156
    %234 = vmatpush.msra.mxu0 %v155
    %235 = vmatpush.msra.mxu0 %v154
    %236 = vmatpush.msra.mxu0 %v153
    %237 = vmatpush.msra.mxu0 %v152
    %238 = vmatpush.msra.mxu0 %v151
    %239 = vmatmul.f32.gmra.mxu0 %v117
    %v240 = vpop.f32.mrf.mxu0
    %v241 = vadd.f32 %v221, %v240
    %242 = vdwg.mxu0
    %243 = vmatpush.msra.mxu0 %v182
    %244 = vmatpush.msra.mxu0 %v181
    %245 = vmatpush.msra.mxu0 %v180
    %246 = vmatpush.msra.mxu0 %v179
    %247 = vmatpush.msra.mxu0 %v178
    %248 = vmatpush.msra.mxu0 %v177
    %249 = vmatpush.msra.mxu0 %v176
    %250 = vmatpush.msra.mxu0 %v175
    %251 = vmatpush.msra.mxu0 %v174
    %252 = vmatpush.msra.mxu0 %v173
    %253 = vmatpush.msra.mxu0 %v172
    %254 = vmatpush.msra.mxu0 %v171
    %255 = vmatpush.msra.mxu0 %v170
    %256 = vmatpush.msra.mxu0 %v169
    %257 = vmatpush.msra.mxu0 %v168
    %258 = vmatpush.msra.mxu0 %v167
    %259 = vmatmul.f32.gmra.mxu0 %v118
    %v260 = vpop.f32.mrf.mxu0
    %v261 = vadd.f32 %v241, %v260
    %262 = vdwg.mxu0
    %v263 = vld [vmem:[%s2] sm:$0xff]
    %v264 = vld [vmem:[%s2 + $0x8] sm:$0xff]
    %v265 = vld [vmem:[%s2 + $0x10] sm:$0xff]
    %v266 = vld [vmem:[%s2 + $0x18] sm:$0xff]
    %v267 = vld [vmem:[%s2 + $0x20] sm:$0xff]
    %v268 = vld [vmem:[%s2 + $0x28] sm:$0xff]
    %v269 = vld [vmem:[%s2 + $0x30] sm:$0xff]
    %v270 = vld [vmem:[%s2 + $0x38] sm:$0xff]
    %v271 = vld [vmem:[%s2 + $0x40] sm:$0xff]
    %v272 = vld [vmem:[%s2 + $0x48] sm:$0xff]
    %v273 = vld [vmem:[%s2 + $0x50] sm:$0xff]
    %v274 = vld [vmem:[%s2 + $0x58] sm:$0xff]
    %v275 = vld [vmem:[%s2 + $0x60] sm:$0xff]
    %v276 = vld [vmem:[%s2 + $0x68] sm:$0xff]
    %v277 = vld [vmem:[%s2 + $0x70] sm:$0xff]
    %v278 = vld [vmem:[%s2 + $0x78] sm:$0xff]
    %v279 = vld [vmem:[%s3] sm:$0x1]
    %v281 = vperm.slane %v279, 0
    %283 = vmatpush.msra.mxu0 %v278
    %284 = vmatpush.msra.mxu0 %v277
    %285 = vmatpush.msra.mxu0 %v276
    %286 = vmatpush.msra.mxu0 %v275
    %287 = vmatpush.msra.mxu0 %v274
    %288 = vmatpush.msra.mxu0 %v273
    %289 = vmatpush.msra.mxu0 %v272
    %290 = vmatpush.msra.mxu0 %v271
    %291 = vmatpush.msra.mxu0 %v270
    %292 = vmatpush.msra.mxu0 %v269
    %293 = vmatpush.msra.mxu0 %v268
    %294 = vmatpush.msra.mxu0 %v267
    %295 = vmatpush.msra.mxu0 %v266
    %296 = vmatpush.msra.mxu0 %v265
    %297 = vmatpush.msra.mxu0 %v264
    %298 = vmatpush.msra.mxu0 %v263
    %299 = vmatmul.f32.gmra.mxu0 %v261
    %v300 = vpop.f32.mrf.mxu0
    %v301 = vadd.f32 %v281, %v300
    %302 = vdwg.mxu0
    %v303 = vtanh.pop %v301
    %v304 = vld [vmem:[%s4] sm:$0xff]
    %v305 = vld [vmem:[%s4 + $0x8] sm:$0xff]
    %v306 = vld [vmem:[%s4 + $0x10] sm:$0xff]
    %v307 = vld [vmem:[%s4 + $0x18] sm:$0xff]
    %v308 = vld [vmem:[%s4 + $0x20] sm:$0xff]
    %v309 = vld [vmem:[%s4 + $0x28] sm:$0xff]
    %v310 = vld [vmem:[%s4 + $0x30] sm:$0xff]
    %v311 = vld [vmem:[%s4 + $0x38] sm:$0xff]
    %v312 = vld [vmem:[%s4 + $0x40] sm:$0xff]
    %v313 = vld [vmem:[%s4 + $0x48] sm:$0xff]
    %v314 = vld [vmem:[%s4 + $0x50] sm:$0xff]
    %v315 = vld [vmem:[%s4 + $0x58] sm:$0xff]
    %v316 = vld [vmem:[%s4 + $0x60] sm:$0xff]
    %v317 = vld [vmem:[%s4 + $0x68] sm:$0xff]
    %v318 = vld [vmem:[%s4 + $0x70] sm:$0xff]
    %v319 = vld [vmem:[%s4 + $0x78] sm:$0xff]
    %v320 = vld [vmem:[%s5] sm:$0xf]
    %v322 = vperm.slane %v320, 0
    %v323 = vperm.slane %v320, 1
    %v324 = vperm.slane %v320, 2
    %v325 = vperm.slane %v320, 3
    %vm330 = vcmask 261120
    %v332 = vsel %vm330, %v303, 0
    %334 = vmatpush.msra.mxu0 0.0
    %335 = vmatpush.msra.mxu0 0.0
    %336 = vmatpush.msra.mxu0 0.0
    %337 = vmatpush.msra.mxu0 0.0
    %338 = vmatpush.msra.mxu0 0.0
    %339 = vmatpush.msra.mxu0 0.0
    %340 = vmatpush.msra.mxu0 0.0
    %341 = vmatpush.msra.mxu0 0.0
    %342 = vmatpush.msra.mxu0 0.0
    %343 = vmatpush.msra.mxu0 0.0
    %344 = vmatpush.msra.mxu0 0.0
    %345 = vmatpush.msra.mxu0 0.0
    %346 = vmatpush.msra.mxu0 %v316
    %347 = vmatpush.msra.mxu0 %v312
    %348 = vmatpush.msra.mxu0 %v308
    %349 = vmatpush.msra.mxu0 %v304
    %350 = vmatmul.f32.gmra.mxu0 %v332
    %v351 = vpop.f32.mrf.mxu0
    %v352 = vadd.f32 %v322, %v351
    %353 = vdwg.mxu0
    %354 = vmatpush.msra.mxu0 0.0
    %355 = vmatpush.msra.mxu0 0.0
    %356 = vmatpush.msra.mxu0 0.0
    %357 = vmatpush.msra.mxu0 0.0
    %358 = vmatpush.msra.mxu0 0.0
    %359 = vmatpush.msra.mxu0 0.0
    %360 = vmatpush.msra.mxu0 0.0
    %361 = vmatpush.msra.mxu0 0.0
    %362 = vmatpush.msra.mxu0 0.0
    %363 = vmatpush.msra.mxu0 0.0
    %364 = vmatpush.msra.mxu0 0.0
    %365 = vmatpush.msra.mxu0 0.0
    %366 = vmatpush.msra.mxu0 %v317
    %367 = vmatpush.msra.mxu0 %v313
    %368 = vmatpush.msra.mxu0 %v309
    %369 = vmatpush.msra.mxu0 %v305
    %370 = vmatmul.f32.gmra.mxu0 %v332
    %v371 = vpop.f32.mrf.mxu0
    %v372 = vadd.f32 %v323, %v371
    %373 = vdwg.mxu0
    %374 = vmatpush.msra.mxu0 0.0
    %375 = vmatpush.msra.mxu0 0.0
    %376 = vmatpush.msra.mxu0 0.0
    %377 = vmatpush.msra.mxu0 0.0
    %378 = vmatpush.msra.mxu0 0.0
    %379 = vmatpush.msra.mxu0 0.0
    %380 = vmatpush.msra.mxu0 0.0
    %381 = vmatpush.msra.mxu0 0.0
    %382 = vmatpush.msra.mxu0 0.0
    %383 = vmatpush.msra.mxu0 0.0
    %384 = vmatpush.msra.mxu0 0.0
    %385 = vmatpush.msra.mxu0 0.0
    %386 = vmatpush.msra.mxu0 %v318
    %387 = vmatpush.msra.mxu0 %v314
    %388 = vmatpush.msra.mxu0 %v310
    %389 = vmatpush.msra.mxu0 %v306
    %390 = vmatmul.f32.gmra.mxu0 %v332
    %v391 = vpop.f32.mrf.mxu0
    %v392 = vadd.f32 %v324, %v391
    %393 = vdwg.mxu0
    %394 = vmatpush.msra.mxu0 0.0
    %395 = vmatpush.msra.mxu0 0.0
    %396 = vmatpush.msra.mxu0 0.0
    %397 = vmatpush.msra.mxu0 0.0
    %398 = vmatpush.msra.mxu0 0.0
    %399 = vmatpush.msra.mxu0 0.0
    %400 = vmatpush.msra.mxu0 0.0
    %401 = vmatpush.msra.mxu0 0.0
    %402 = vmatpush.msra.mxu0 0.0
    %403 = vmatpush.msra.mxu0 0.0
    %404 = vmatpush.msra.mxu0 0.0
    %405 = vmatpush.msra.mxu0 0.0
    %406 = vmatpush.msra.mxu0 %v319
    %407 = vmatpush.msra.mxu0 %v315
    %408 = vmatpush.msra.mxu0 %v311
    %409 = vmatpush.msra.mxu0 %v307
    %410 = vmatmul.f32.gmra.mxu0 %v332
    %v411 = vpop.f32.mrf.mxu0
    %v412 = vadd.f32 %v325, %v411
    %413 = vdwg.mxu0
    %414 = vst [vmem:[%s6] sm:$0xff] %v352
    %415 = vst [vmem:[%s6 + $0x8] sm:$0xff] %v372
    %416 = vst [vmem:[%s6 + $0x10] sm:$0xff] %v392
    %417 = vst [vmem:[%s6 + $0x18] sm:$0xff] %v412
    // Predicated region
    $region34: #{bengionet_forward.1} parent=1 // pred_check
      _
    $region35: #{bengionet_forward.1} parent=1 // pred_check_branch
      %419 = sbr.rel (0) target = $region37
    $region36: #{bengionet_forward.1} parent=1 // pred_region
      _
    $region37: #{bengionet_forward.1} parent=1 // pred_fallthru
      _
    // Predicated region
    $region38: #{bengionet_forward.1} parent=1 // pred_check
      _
    $region39: #{bengionet_forward.1} parent=1 // pred_check_branch
      %421 = sbr.rel (0) target = $region41
    $region40: #{bengionet_forward.1} parent=1 // pred_region
      _
    $region41: #{bengionet_forward.1} parent=1 // pred_fallthru
      _
    %422 = vsyncpa [#allocation3], 1
    %423 = vsyncpa [#allocation4], 1

</llo_original>
